<compile_context>
chip_gen: v7x
topology: tpu7x:2x2x1
jax: 0.10.0
libtpu: 0.0.40
codegen_flags: <defaults>
</compile_context>

<pallas_src>
import functools

import jax
import jax.numpy as jnp
from jax.experimental import pallas as pl
from jax.experimental.pallas import tpu as pltpu


# ----------------------------------------------------------------------------
# Scaled-down ModelArgs (structure preserved: softmax gate, 1 expert group,
# no gate bias since dim != 7168, route_scale = 1.0).
# ----------------------------------------------------------------------------
CFG = dict(
    dim=128,
    moe_inter_dim=128,
    n_routed_experts=8,
    n_shared_experts=2,
    n_activated_experts=2,
    route_scale=1.0,
)


def _round_up(x, m):
    return (x + m - 1) // m * m


# ----------------------------------------------------------------------------
# Fused MoE kernel.
# grid = (token_tiles, n_experts); expert axis is the (innermost) reduction.
# Per (t, e) step:
#   h   = x_t @ W13_e            (bf16 MXU, f32 acc; W13 = [W1;W3] fused)
#   g   = silu(h1) * h3          (f32 VPU/EUP, cast to bf16 at MXU boundary)
#   acc += (g @ W2_e) * cw[e, t] (per-token routing weight; 0 if unselected)
# On the last expert step the shared-expert MLP is computed and added, and
# the final bf16 output written once.
# ----------------------------------------------------------------------------
def _moe_kernel(x_ref, w13_ref, w2_ref, cw_ref, sh_w13_ref, sh_w2_ref,
                o_ref, acc_ref, *, inter, sh_inter):
    e = pl.program_id(1)

    @pl.when(e == 0)
    def _init():
        acc_ref[...] = jnp.zeros_like(acc_ref)

    x = x_ref[...]                                                   # (TM, D) bf16
    h = jnp.dot(x, w13_ref[...], preferred_element_type=jnp.float32)  # (TM, 2I) f32
    g = (jax.nn.silu(h[:, :inter]) * h[:, inter:]).astype(jnp.bfloat16)
    out = jnp.dot(g, w2_ref[...], preferred_element_type=jnp.float32)  # (TM, D) f32
    acc_ref[...] += out * cw_ref[...]                                 # (TM, 1) f32 weight

    @pl.when(e == pl.num_programs(1) - 1)
    def _epilogue():
        # Shared-expert MLP + residual add, fused so the routed accumulator
        # never round-trips HBM in f32.
        hs = jnp.dot(x, sh_w13_ref[...], preferred_element_type=jnp.float32)
        gs = (jax.nn.silu(hs[:, :sh_inter]) * hs[:, sh_inter:]).astype(jnp.bfloat16)
        shared = jnp.dot(gs, sh_w2_ref[...], preferred_element_type=jnp.float32)
        o_ref[...] = (acc_ref[...] + shared).astype(o_ref.dtype)


def pallas_moe(xf, w13_t, w2_t, combine, sh_w13_t, sh_w2_t, *, tm, out_dtype):
    n_pad, D = xf.shape
    E, _, two_inter = w13_t.shape
    inter = two_inter // 2
    sh_two = sh_w13_t.shape[1]
    sh_inter = sh_two // 2
    n_tiles = n_pad // tm

    # Rough VMEM budget: double-buffered pipelined inputs + output + f32 acc.
    bf, f4 = 2, 4
    est = (2 * tm * D * bf                       # x tile
           + 2 * D * two_inter * bf              # per-expert W13 tile
           + 2 * inter * D * bf                  # per-expert W2 tile
           + 2 * tm * 128 * f4                   # routing-weight column (lane-padded)
           + 2 * D * sh_two * bf                 # shared W13 (resident)
           + 2 * sh_inter * D * bf               # shared W2 (resident)
           + 2 * tm * D * bf                     # output tile
           + tm * D * f4)                        # f32 accumulator scratch
    vmem_limit = min(64 * 1024 * 1024, max(32 * 1024 * 1024, 2 * est))

    return pl.pallas_call(
        functools.partial(_moe_kernel, inter=inter, sh_inter=sh_inter),
        out_shape=jax.ShapeDtypeStruct((n_pad, D), out_dtype),
        grid=(n_tiles, E),
        in_specs=[
            pl.BlockSpec((tm, D), lambda t, e: (t, 0)),               # x tile (resident over e)
            pl.BlockSpec((None, D, two_inter), lambda t, e: (e, 0, 0)),  # W13_e
            pl.BlockSpec((None, inter, D), lambda t, e: (e, 0, 0)),      # W2_e
            pl.BlockSpec((None, tm, 1), lambda t, e: (e, t, 0)),         # routing weight col
            pl.BlockSpec((D, sh_two), lambda t, e: (0, 0)),              # shared W13 (resident)
            pl.BlockSpec((sh_inter, D), lambda t, e: (0, 0)),            # shared W2 (resident)
        ],
        out_specs=pl.BlockSpec((tm, D), lambda t, e: (t, 0)),
        scratch_shapes=[pltpu.VMEM((tm, D), jnp.float32)],
        compiler_params=pltpu.CompilerParams(
            dimension_semantics=("parallel", "arbitrary"),
            vmem_limit_bytes=vmem_limit,
        ),
    )(xf, w13_t, w2_t, combine, sh_w13_t, sh_w2_t)


# ----------------------------------------------------------------------------
# Plain-JAX glue: gate (softmax + top-k), dense combine-weight build, padding.
# TODO(synk): at scale, fuse gate + top-k + group-offset build into a small
# prologue kernel and switch the expert sweep to a grouped matmul.
# ----------------------------------------------------------------------------
def moe_forward(params, x, cfg):
    B, S, D = x.shape
    N = B * S
    E = cfg["n_routed_experts"]
    k = cfg["n_activated_experts"]

    xf = x.reshape(N, D)

    # Gate: scores = softmax(x @ Wg^T) in f32 (matches softmax(dtype=f32)).
    # Tiny (N x E) matmul -> not worth a kernel launch.
    scores = jax.nn.softmax(
        jnp.dot(xf.astype(jnp.float32), params["gate_w"].T), axis=-1)   # (N, E) f32
    weights, indices = jax.lax.top_k(scores, k)                         # (N, k)
    # weights.type_as(x) * route_scale (bf16 rounding as in the reference).
    weights = (weights.astype(x.dtype) * cfg["route_scale"]).astype(jnp.float32)

    # Dense per-expert combine weights (zero for unselected experts).
    combine_ne = jnp.zeros((N, E), jnp.float32).at[
        jnp.arange(N)[:, None], indices].add(weights)                   # (N, E)

    # Token tiling: TM tokens per block (sublane multiple); pad N if needed.
    tm = min(256, _round_up(N, 8))
    n_pad = _round_up(N, tm)
    if n_pad != N:
        xf = jnp.pad(xf, ((0, n_pad - N), (0, 0)))
        combine_ne = jnp.pad(combine_ne, ((0, n_pad - N), (0, 0)))
    # Lay out routing weights as (E, N, 1) so the kernel reads a (TM, 1)
    # column per expert directly.
    combine = combine_ne.T.reshape(E, n_pad, 1)

    out = pallas_moe(xf, params["w13_t"], params["w2_t"], combine,
                     params["sh_w13_t"], params["sh_w2_t"],
                     tm=tm, out_dtype=x.dtype)
    return out[:N].reshape(B, S, D)


# ----------------------------------------------------------------------------
# Pure-JAX reference (same arithmetic, no Pallas) for a correctness check.
# ----------------------------------------------------------------------------
def moe_reference(params, x, cfg):
    B, S, D = x.shape
    N = B * S
    E = cfg["n_routed_experts"]
    k = cfg["n_activated_experts"]
    inter = cfg["moe_inter_dim"]
    sh_inter = cfg["n_shared_experts"] * inter

    xf = x.reshape(N, D)
    scores = jax.nn.softmax(
        jnp.dot(xf.astype(jnp.float32), params["gate_w"].T), axis=-1)
    weights, indices = jax.lax.top_k(scores, k)
    weights = (weights.astype(x.dtype) * cfg["route_scale"]).astype(jnp.float32)
    combine = jnp.zeros((N, E), jnp.float32).at[
        jnp.arange(N)[:, None], indices].add(weights)

    y = jnp.zeros((N, D), jnp.float32)
    for e in range(E):
        h = jnp.dot(xf, params["w13_t"][e], preferred_element_type=jnp.float32)
        g = (jax.nn.silu(h[:, :inter]) * h[:, inter:]).astype(jnp.bfloat16)
        y = y + jnp.dot(g, params["w2_t"][e],
                        preferred_element_type=jnp.float32) * combine[:, e:e + 1]

    hs = jnp.dot(xf, params["sh_w13_t"], preferred_element_type=jnp.float32)
    gs = (jax.nn.silu(hs[:, :sh_inter]) * hs[:, sh_inter:]).astype(jnp.bfloat16)
    shared = jnp.dot(gs, params["sh_w2_t"], preferred_element_type=jnp.float32)
    return (y + shared).astype(x.dtype).reshape(B, S, D)


# ----------------------------------------------------------------------------
# Parameter init (matches the PyTorch reference's Linear init / Gate init).
# ----------------------------------------------------------------------------
def init_params(key, cfg):
    D = cfg["dim"]
    I = cfg["moe_inter_dim"]
    E = cfg["n_routed_experts"]
    SI = cfg["n_shared_experts"] * I
    ks = jax.random.split(key, 7)

    def lin_w(k, shape, in_f):
        # matches Linear.__init__: randn(out, in) * in**-0.5, bf16
        return (jax.random.normal(k, shape, jnp.float32) * in_f ** (-0.5)
                ).astype(jnp.bfloat16)

    # Routed experts, stacked over E; pre-transposed / fused for the kernel.
    w1 = lin_w(ks[0], (E, I, D), D)
    w3 = lin_w(ks[1], (E, I, D), D)
    w2 = lin_w(ks[2], (E, D, I), I)
    w13_t = jnp.concatenate([w1, w3], axis=1).transpose(0, 2, 1)   # (E, D, 2I)
    w2_t = w2.transpose(0, 2, 1)                                    # (E, I, D)

    # Shared-expert MLP (inter = n_shared_experts * moe_inter_dim).
    sw1 = lin_w(ks[3], (SI, D), D)
    sw3 = lin_w(ks[4], (SI, D), D)
    sw2 = lin_w(ks[5], (D, SI), SI)
    sh_w13_t = jnp.concatenate([sw1, sw3], axis=0).T                # (D, 2*SI)
    sh_w2_t = sw2.T                                                 # (SI, D)

    # Gate weight: torch.randn(E, D) f32, unscaled (matches reference Gate).
    gate_w = jax.random.normal(ks[6], (E, D), jnp.float32)

    return dict(
        w13_t=w13_t, w2_t=w2_t,
        sh_w13_t=sh_w13_t, sh_w2_t=sh_w2_t,
        gate_w=gate_w,
    )


# ----------------------------------------------------------------------------
if __name__ == "__main__":
    key = jax.random.PRNGKey(0)
    pkey, xkey = jax.random.split(key)
    params = init_params(pkey, CFG)

    B, S = 2, 8
    x = jax.random.normal(xkey, (B, S, CFG["dim"]), jnp.float32).astype(jnp.bfloat16)

    fwd = jax.jit(functools.partial(moe_forward, cfg=CFG))
    out = fwd(params, x)
    jax.block_until_ready(out)

    assert out.shape == (B, S, CFG["dim"]), out.shape
    assert bool(jnp.isfinite(out.astype(jnp.float32)).all())

    ref = moe_reference(params, x, CFG)
    assert bool(jnp.allclose(out.astype(jnp.float32), ref.astype(jnp.float32),
                             rtol=2e-2, atol=2e-2)), "mismatch vs plain-JAX reference"

    print("KERNEL_OK")
</pallas_src>

<mosaic_0001>
module attributes {stable_mosaic.version = 11 : i64} {
  func.func private @main(%arg0: i32) attributes {dimension_semantics = [#tpu.dimension_semantics<core_parallel>], iteration_bounds = array<i64: 2>, tpu.core_type = #tpu.core_type<sc_scalar_subcore>, window_params = []} {
    return
  }
}

module attributes {stable_mosaic.version = 11 : i64} {
  func.func private @main(%arg0: i32) attributes {dimension_semantics = [#tpu.dimension_semantics<core_parallel>], iteration_bounds = array<i64: 2>, tpu.core_type = #tpu.core_type<sc_scalar_subcore>, window_params = []} {
    return
  }
}

module attributes {stable_mosaic.version = 11 : i64} {
  func.func @_moe_kernel(%arg0: i32, %arg1: i32, %arg2: memref<16x128xbf16, #tpu.memory_space<vmem>>, %arg3: memref<1x128x256xbf16, #tpu.memory_space<vmem>>, %arg4: memref<1x128x128xbf16, #tpu.memory_space<vmem>>, %arg5: memref<1x16x1xf32, #tpu.memory_space<vmem>>, %arg6: memref<128x512xbf16, #tpu.memory_space<vmem>>, %arg7: memref<256x128xbf16, #tpu.memory_space<vmem>>, %arg8: memref<16x128xbf16, #tpu.memory_space<vmem>>, %arg9: memref<16x128xf32, #tpu.memory_space<vmem>>) attributes {dimension_semantics = [#tpu.dimension_semantics<parallel>, #tpu.dimension_semantics<arbitrary>], iteration_bounds = array<i64: 1, 8>, scalar_prefetch = 0 : i64, scratch_operands = 1 : i64, tpu.core_type = #tpu.core_type<tc>, window_params = [{transform_indices = @transform_0, window_bounds = array<i64: 16, 128>}, {transform_indices = @transform_1, window_bounds = array<i64: 1, 128, 256>}, {transform_indices = @transform_2, window_bounds = array<i64: 1, 128, 128>}, {transform_indices = @transform_3, window_bounds = array<i64: 1, 16, 1>}, {pipeline_mode = #tpu.pipeline_mode<synchronous>, transform_indices = @transform_4, window_bounds = array<i64: 128, 512>}, {pipeline_mode = #tpu.pipeline_mode<synchronous>, transform_indices = @transform_5, window_bounds = array<i64: 256, 128>}, {transform_indices = @transform_6, window_bounds = array<i64: 16, 128>}]} {
    %c0_i32 = arith.constant 0 : i32
    %0 = arith.cmpi eq, %arg1, %c0_i32 : i32
    %1 = arith.extui %0 : i1 to i32
    %c0_i32_0 = arith.constant 0 : i32
    %2 = arith.cmpi ne, %1, %c0_i32_0 : i32
    scf.if %2 {
      %cst_18 = arith.constant 0.000000e+00 : f32
      %30 = vector.broadcast %cst_18 : f32 to vector<16x128xf32>
      %c0_19 = arith.constant 0 : index
      %c0_20 = arith.constant 0 : index
      %31 = vector.load %arg9[%c0_19, %c0_20] : memref<16x128xf32, #tpu.memory_space<vmem>>, vector<16x128xf32>
      tpu.vector_store %arg9[%c0_19, %c0_20], %30 {strides = array<i32>} : memref<16x128xf32, #tpu.memory_space<vmem>>, vector<16x128xf32>,
    } else {
    }
    %c0 = arith.constant 0 : index
    %c0_1 = arith.constant 0 : index
    %3 = vector.load %arg2[%c0, %c0_1] : memref<16x128xbf16, #tpu.memory_space<vmem>>, vector<16x128xbf16>
    %c0_2 = arith.constant 0 : index
    %c0_3 = arith.constant 0 : index
    %c0_4 = arith.constant 0 : index
    %4 = vector.load %arg3[%c0_2, %c0_3, %c0_4] : memref<1x128x256xbf16, #tpu.memory_space<vmem>>, vector<1x128x256xbf16>
    %5 = vector.shape_cast %4 : vector<1x128x256xbf16> to vector<128x256xbf16>
    %cst = arith.constant dense<0.000000e+00> : vector<16x256xf32>
    %6 = tpu.matmul %3, %5, %cst {dimension_numbers = #tpu.dot_dimension_numbers<[1], [0], [0], [1], [0, 0, 1, 1], [], []>} : vector<16x128xbf16>, vector<128x256xbf16>, vector<16x256xf32> -> vector<16x256xf32>
    %7 = vector.extract_strided_slice %6 {offsets = [0, 0], sizes = [16, 128], strides = [1, 1]} : vector<16x256xf32> to vector<16x128xf32>
    %8 = arith.negf %7 : vector<16x128xf32>
    %9 = math.exp %8 : vector<16x128xf32>
    %cst_5 = arith.constant 1.000000e+00 : f32
    %10 = vector.broadcast %cst_5 : f32 to vector<16x128xf32>
    %11 = arith.addf %10, %9 : vector<16x128xf32>
    %12 = arith.divf %10, %11 : vector<16x128xf32>
    %13 = arith.mulf %7, %12 : vector<16x128xf32>
    %14 = vector.extract_strided_slice %6 {offsets = [0, 128], sizes = [16, 128], strides = [1, 1]} : vector<16x256xf32> to vector<16x128xf32>
    %15 = arith.mulf %13, %14 : vector<16x128xf32>
    %16 = arith.truncf %15 : vector<16x128xf32> to vector<16x128xbf16>
    %c0_6 = arith.constant 0 : index
    %c0_7 = arith.constant 0 : index
    %c0_8 = arith.constant 0 : index
    %17 = vector.load %arg4[%c0_6, %c0_7, %c0_8] : memref<1x128x128xbf16, #tpu.memory_space<vmem>>, vector<1x128x128xbf16>
    %18 = vector.shape_cast %17 : vector<1x128x128xbf16> to vector<128x128xbf16>
    %cst_9 = arith.constant dense<0.000000e+00> : vector<16x128xf32>
    %19 = tpu.matmul %16, %18, %cst_9 {dimension_numbers = #tpu.dot_dimension_numbers<[1], [0], [0], [1], [0, 0, 1, 1], [], []>} : vector<16x128xbf16>, vector<128x128xbf16>, vector<16x128xf32> -> vector<16x128xf32>
    %c0_10 = arith.constant 0 : index
    %c0_11 = arith.constant 0 : index
    %20 = vector.load %arg9[%c0_10, %c0_11] : memref<16x128xf32, #tpu.memory_space<vmem>>, vector<16x128xf32>
    %c0_12 = arith.constant 0 : index
    %c0_13 = arith.constant 0 : index
    %c0_14 = arith.constant 0 : index
    %21 = vector.load %arg5[%c0_12, %c0_13, %c0_14] : memref<1x16x1xf32, #tpu.memory_space<vmem>>, vector<1x16x1xf32>
    %22 = vector.shape_cast %21 : vector<1x16x1xf32> to vector<16x1xf32>
    %23 = vector.broadcast %22 : vector<16x1xf32> to vector<16x128xf32>
    %24 = arith.mulf %19, %23 : vector<16x128xf32>
    %25 = arith.addf %20, %24 : vector<16x128xf32>
    %c0_15 = arith.constant 0 : index
    %c0_16 = arith.constant 0 : index
    %26 = vector.load %arg9[%c0_15, %c0_16] : memref<16x128xf32, #tpu.memory_space<vmem>>, vector<16x128xf32>
    tpu.vector_store %arg9[%c0_15, %c0_16], %25 {strides = array<i32>} : memref<16x128xf32, #tpu.memory_space<vmem>>, vector<16x128xf32>,
    %c7_i32 = arith.constant 7 : i32
    %27 = arith.cmpi eq, %arg1, %c7_i32 : i32
    %28 = arith.extui %27 : i1 to i32
    %c0_i32_17 = arith.constant 0 : i32
    %29 = arith.cmpi ne, %28, %c0_i32_17 : i32
    scf.if %29 {
      %c0_18 = arith.constant 0 : index
      %c0_19 = arith.constant 0 : index
      %30 = vector.load %arg6[%c0_18, %c0_19] : memref<128x512xbf16, #tpu.memory_space<vmem>>, vector<128x512xbf16>
      %cst_20 = arith.constant dense<0.000000e+00> : vector<16x512xf32>
      %31 = tpu.matmul %3, %30, %cst_20 {dimension_numbers = #tpu.dot_dimension_numbers<[1], [0], [0], [1], [0, 0, 1, 1], [], []>} : vector<16x128xbf16>, vector<128x512xbf16>, vector<16x512xf32> -> vector<16x512xf32>
      %32 = vector.extract_strided_slice %31 {offsets = [0, 0], sizes = [16, 256], strides = [1, 1]} : vector<16x512xf32> to vector<16x256xf32>
      %33 = arith.negf %32 : vector<16x256xf32>
      %34 = math.exp %33 : vector<16x256xf32>
      %cst_21 = arith.constant 1.000000e+00 : f32
      %35 = vector.broadcast %cst_21 : f32 to vector<16x256xf32>
      %36 = arith.addf %35, %34 : vector<16x256xf32>
      %37 = arith.divf %35, %36 : vector<16x256xf32>
      %38 = arith.mulf %32, %37 : vector<16x256xf32>
      %39 = vector.extract_strided_slice %31 {offsets = [0, 256], sizes = [16, 256], strides = [1, 1]} : vector<16x512xf32> to vector<16x256xf32>
      %40 = arith.mulf %38, %39 : vector<16x256xf32>
      %41 = arith.truncf %40 : vector<16x256xf32> to vector<16x256xbf16>
      %c0_22 = arith.constant 0 : index
      %c0_23 = arith.constant 0 : index
      %42 = vector.load %arg7[%c0_22, %c0_23] : memref<256x128xbf16, #tpu.memory_space<vmem>>, vector<256x128xbf16>
      %cst_24 = arith.constant dense<0.000000e+00> : vector<16x128xf32>
      %43 = tpu.matmul %41, %42, %cst_24 {dimension_numbers = #tpu.dot_dimension_numbers<[1], [0], [0], [1], [0, 0, 1, 1], [], []>} : vector<16x256xbf16>, vector<256x128xbf16>, vector<16x128xf32> -> vector<16x128xf32>
      %c0_25 = arith.constant 0 : index
      %c0_26 = arith.constant 0 : index
      %44 = vector.load %arg9[%c0_25, %c0_26] : memref<16x128xf32, #tpu.memory_space<vmem>>, vector<16x128xf32>
      %45 = arith.addf %44, %43 : vector<16x128xf32>
      %46 = arith.truncf %45 : vector<16x128xf32> to vector<16x128xbf16>
      %c0_27 = arith.constant 0 : index
      %c0_28 = arith.constant 0 : index
      %47 = vector.load %arg8[%c0_27, %c0_28] : memref<16x128xbf16, #tpu.memory_space<vmem>>, vector<16x128xbf16>
      tpu.vector_store %arg8[%c0_27, %c0_28], %46 {strides = array<i32>} : memref<16x128xbf16, #tpu.memory_space<vmem>>, vector<16x128xbf16>,
    } else {
    }
    return
  }
  func.func @transform_0(%arg0: i32, %arg1: i32) -> (i32, i32) {
    %c0_i32 = arith.constant 0 : i32
    %c0_i32_0 = arith.constant 0 : i32
    return %arg0, %c0_i32 : i32, i32
  }
  func.func @transform_1(%arg0: i32, %arg1: i32) -> (i32, i32, i32) {
    %c0_i32 = arith.constant 0 : i32
    %c0_i32_0 = arith.constant 0 : i32
    %c0_i32_1 = arith.constant 0 : i32
    return %arg1, %c0_i32, %c0_i32_0 : i32, i32, i32
  }
  func.func @transform_2(%arg0: i32, %arg1: i32) -> (i32, i32, i32) {
    %c0_i32 = arith.constant 0 : i32
    %c0_i32_0 = arith.constant 0 : i32
    %c0_i32_1 = arith.constant 0 : i32
    return %arg1, %c0_i32, %c0_i32_0 : i32, i32, i32
  }
  func.func @transform_3(%arg0: i32, %arg1: i32) -> (i32, i32, i32) {
    %c0_i32 = arith.constant 0 : i32
    %c0_i32_0 = arith.constant 0 : i32
    return %arg1, %arg0, %c0_i32 : i32, i32, i32
  }
  func.func @transform_4(%arg0: i32, %arg1: i32) -> (i32, i32) {
    %c0_i32 = arith.constant 0 : i32
    %c0_i32_0 = arith.constant 0 : i32
    %c0_i32_1 = arith.constant 0 : i32
    return %c0_i32, %c0_i32_0 : i32, i32
  }
  func.func @transform_5(%arg0: i32, %arg1: i32) -> (i32, i32) {
    %c0_i32 = arith.constant 0 : i32
    %c0_i32_0 = arith.constant 0 : i32
    %c0_i32_1 = arith.constant 0 : i32
    return %c0_i32, %c0_i32_0 : i32, i32
  }
  func.func @transform_6(%arg0: i32, %arg1: i32) -> (i32, i32) {
    %c0_i32 = arith.constant 0 : i32
    %c0_i32_0 = arith.constant 0 : i32
    return %arg0, %c0_i32 : i32, i32
  }
}

</mosaic_0001>

<llo_original>
// kernel: moe_forward.1
$region0: #{moe_forward.1}
  #allocation0 [shape = 'u32[]', space=smem, size = 0x4, offset = 0x4, fixed_abs, tag = 'smem constant byte address 0x4 - core index']
  #allocation1 [shape = 'u32[144,128]{1,0:T(1,128)}', space=vmem, size = 0x12000, scoped, tag = 'internal scratch']
  #allocation2 [shape = 'f32[16,128]{1,0:T(8,128)}', space=vmem, size = 0x2000, scoped, tag = 'scratch operand']
  %s0 = inlined_call_operand.vmem [shape: bf16[16,128], index: 0, kind: input, shape index: {}]
  %s1 = inlined_call_operand.vmem [shape: bf16[8,128,256], index: 1, kind: input, shape index: {}]
  %s2 = inlined_call_operand.vmem [shape: bf16[8,128,128], index: 2, kind: input, shape index: {}]
  %s3 = inlined_call_operand.vmem [shape: f32[8,16,1], index: 3, kind: input, shape index: {}]
  %s4 = inlined_call_operand.vmem [shape: bf16[128,512], index: 4, kind: input, shape index: {}]
  %s5 = inlined_call_operand.vmem [shape: bf16[256,128], index: 5, kind: input, shape index: {}]
  %s6 = inlined_call_operand.hbm [shape: bf16[16,128], index: 6, kind: output, shape index: {}]
  %s7 = sld [smem:[#allocation0]]
  $region65: #{moe_forward.1} parent=0
    _
  %s9 = ssub.s32 1, %s7
  %s10 = scalar_select 0, %s9, %s7
  $region1: #{moe_forward.1} parent=0
    #allocation3 [shape = 'u8[4096]{0}', space=vmem, size = 0x1000, scoped, tag = 'output window, operand 0, single buffered']
    #allocation4 [shape = 's32[2]{0}', space=sflag, size = 0x8, scoped, tag = 'scoped memory for moe_forward.1']
    %11 = vsyncpa [#allocation4], 0
    loop: start=0, step=1, limit=10
    $region2: #{moe_forward.1} parent=1 // loop_pre_header
      _
    $region3: #{moe_forward.1} parent=1 // loop_header
      %s13 = sphi 0, %s17
      %p14 = scmp.ge.s32.totalorder %s13, 10
      %s20 = sphi 0, %s32
      %s21 = sphi 0, %s28
      %s22 = sphi 0, %s20
      %s23 = sphi 0, %s21
      %s24 = sphi 0, %s22
      %s25 = sphi 0, %s23
      %s35 = sphi 0, %s37
      %s38 = sphi 0, %s35
      %s39 = sphi 0, %s38
      %s55 = sphi 0, %s39
      %s61 = sphi 0, %s63
      %s64 = sphi 0, %s61
      %s65 = sphi 0, %s64
      %s81 = sphi 0, %s65
      %s87 = sphi 0, %s89
      %s90 = sphi 0, %s87
      %s91 = sphi 0, %s90
      %s107 = sphi 0, %s91
      %s115 = sphi 0, %s117
      %s118 = sphi 0, %s115
      %s119 = sphi 0, %s118
      %s135 = sphi 0, %s119
      %s139 = sphi 0, %s139
      %s141 = sphi 0, %s139
      %s142 = sphi 0, %s141
      %s156 = sphi 0, %s142
      %s160 = sphi 0, %s160
      %s162 = sphi 0, %s160
      %s163 = sphi 0, %s162
      %s177 = sphi 0, %s163
      %s183 = sphi 0, %s185
      %s186 = sphi 0, %s183
      %s187 = sphi 0, %s186
      %s203 = sphi 0, %s187
    $region4: #{moe_forward.1} parent=1 // loop_header_branch
      %16 = sbr.rel (%p14) target = $region8
    $region5: #{moe_forward.1} parent=1 // loop_body
      %s18 = ssub.s32 %s13, 1
      %s19 = ssub.s32 %s13, 2
      %s26 = sadd.s32 1, %s21
      %p27 = scmp.ge.s32.totalorder %s26, 8
      %s28 = scalar_select %p27, 0, %s26
      %s29 = sadd.s32 1, %s20
      %s30 = scalar_select %p27, %s29, %s20
      %p31 = scmp.ge.s32.totalorder %s30, 1
      %s32 = scalar_select %p31, 0, %s30
      %s33 = ssub.s32 %s20, %s32
      %p34 = scmp.eq.s32.totalorder %s33, 0
      %s36 = sadd.s32 %s35, 1
      %s37 = scalar_select %p34, %s35, %s36
      %p40 = pneg %p34
      %p41 = scmp.eq.s32.totalorder %s13, 7
      %p42 = por %p40, %p41
      %p43 = scmp.ne.s32.totalorder %s35, %s38
      %p44 = scmp.eq.s32.totalorder %s13, 0
      %p45 = por %p43, %p44
      %p46 = scmp.ne.s32.totalorder %s35, %s38
      %p47 = scmp.eq.s32.totalorder %s18, 7
      %p48 = por %p46, %p47
      %p49 = scmp.ne.s32.totalorder %s38, %s39
      %p50 = scmp.eq.s32.totalorder %s18, 0
      %p51 = por %p49, %p50
      %p52 = scmp.ne.s32.totalorder %s38, %s39
      %p53 = scmp.eq.s32.totalorder %s19, 7
      %p54 = por %p52, %p53
      %p56 = scmp.ne.s32.totalorder %s39, %s55
      %p57 = scmp.eq.s32.totalorder %s19, 0
      %p58 = por %p56, %p57
      %s59 = ssub.s32 %s21, %s28
      %p60 = scmp.eq.s32.totalorder %s59, 0
      %s62 = sadd.s32 %s61, 1
      %s63 = scalar_select %p60, %s61, %s62
      %p66 = pneg %p60
      %p67 = scmp.eq.s32.totalorder %s13, 7
      %p68 = por %p66, %p67
      %p69 = scmp.ne.s32.totalorder %s61, %s64
      %p70 = scmp.eq.s32.totalorder %s13, 0
      %p71 = por %p69, %p70
      %p72 = scmp.ne.s32.totalorder %s61, %s64
      %p73 = scmp.eq.s32.totalorder %s18, 7
      %p74 = por %p72, %p73
      %p75 = scmp.ne.s32.totalorder %s64, %s65
      %p76 = scmp.eq.s32.totalorder %s18, 0
      %p77 = por %p75, %p76
      %p78 = scmp.ne.s32.totalorder %s64, %s65
      %p79 = scmp.eq.s32.totalorder %s19, 7
      %p80 = por %p78, %p79
      %p82 = scmp.ne.s32.totalorder %s65, %s81
      %p83 = scmp.eq.s32.totalorder %s19, 0
      %p84 = por %p82, %p83
      %s85 = ssub.s32 %s21, %s28
      %p86 = scmp.eq.s32.totalorder %s85, 0
      %s88 = sadd.s32 %s87, 1
      %s89 = scalar_select %p86, %s87, %s88
      %p92 = pneg %p86
      %p93 = scmp.eq.s32.totalorder %s13, 7
      %p94 = por %p92, %p93
      %p95 = scmp.ne.s32.totalorder %s87, %s90
      %p96 = scmp.eq.s32.totalorder %s13, 0
      %p97 = por %p95, %p96
      %p98 = scmp.ne.s32.totalorder %s87, %s90
      %p99 = scmp.eq.s32.totalorder %s18, 7
      %p100 = por %p98, %p99
      %p101 = scmp.ne.s32.totalorder %s90, %s91
      %p102 = scmp.eq.s32.totalorder %s18, 0
      %p103 = por %p101, %p102
      %p104 = scmp.ne.s32.totalorder %s90, %s91
      %p105 = scmp.eq.s32.totalorder %s19, 7
      %p106 = por %p104, %p105
      %p108 = scmp.ne.s32.totalorder %s91, %s107
      %p109 = scmp.eq.s32.totalorder %s19, 0
      %p110 = por %p108, %p109
      %s111 = ssub.s32 %s21, %s28
      %s112 = ssub.s32 %s20, %s32
      %s113 = sor.u32 %s111, %s112
      %p114 = scmp.eq.s32.totalorder %s113, 0
      %s116 = sadd.s32 %s115, 1
      %s117 = scalar_select %p114, %s115, %s116
      %p120 = pneg %p114
      %p121 = scmp.eq.s32.totalorder %s13, 7
      %p122 = por %p120, %p121
      %p123 = scmp.ne.s32.totalorder %s115, %s118
      %p124 = scmp.eq.s32.totalorder %s13, 0
      %p125 = por %p123, %p124
      %p126 = scmp.ne.s32.totalorder %s115, %s118
      %p127 = scmp.eq.s32.totalorder %s18, 7
      %p128 = por %p126, %p127
      %p129 = scmp.ne.s32.totalorder %s118, %s119
      %p130 = scmp.eq.s32.totalorder %s18, 0
      %p131 = por %p129, %p130
      %p132 = scmp.ne.s32.totalorder %s118, %s119
      %p133 = scmp.eq.s32.totalorder %s19, 7
      %p134 = por %p132, %p133
      %p136 = scmp.ne.s32.totalorder %s119, %s135
      %p137 = scmp.eq.s32.totalorder %s19, 0
      %p138 = por %p136, %p137
      %s140 = sadd.s32 %s139, 1
      %p143 = scmp.eq.s32.totalorder %s13, 7
      %p144 = scmp.ne.s32.totalorder %s139, %s141
      %p145 = scmp.eq.s32.totalorder %s13, 0
      %p146 = por %p144, %p145
      %p147 = scmp.ne.s32.totalorder %s139, %s141
      %p148 = scmp.eq.s32.totalorder %s18, 7
      %p149 = por %p147, %p148
      %p150 = scmp.ne.s32.totalorder %s141, %s142
      %p151 = scmp.eq.s32.totalorder %s18, 0
      %p152 = por %p150, %p151
      %p153 = scmp.ne.s32.totalorder %s141, %s142
      %p154 = scmp.eq.s32.totalorder %s19, 7
      %p155 = por %p153, %p154
      %p157 = scmp.ne.s32.totalorder %s142, %s156
      %p158 = scmp.eq.s32.totalorder %s19, 0
      %p159 = por %p157, %p158
      %s161 = sadd.s32 %s160, 1
      %p164 = scmp.eq.s32.totalorder %s13, 7
      %p165 = scmp.ne.s32.totalorder %s160, %s162
      %p166 = scmp.eq.s32.totalorder %s13, 0
      %p167 = por %p165, %p166
      %p168 = scmp.ne.s32.totalorder %s160, %s162
      %p169 = scmp.eq.s32.totalorder %s18, 7
      %p170 = por %p168, %p169
      %p171 = scmp.ne.s32.totalorder %s162, %s163
      %p172 = scmp.eq.s32.totalorder %s18, 0
      %p173 = por %p171, %p172
      %p174 = scmp.ne.s32.totalorder %s162, %s163
      %p175 = scmp.eq.s32.totalorder %s19, 7
      %p176 = por %p174, %p175
      %p178 = scmp.ne.s32.totalorder %s163, %s177
      %p179 = scmp.eq.s32.totalorder %s19, 0
      %p180 = por %p178, %p179
      %s181 = ssub.s32 %s20, %s32
      %p182 = scmp.eq.s32.totalorder %s181, 0
      %s184 = sadd.s32 %s183, 1
      %s185 = scalar_select %p182, %s183, %s184
      %p188 = pneg %p182
      %p189 = scmp.eq.s32.totalorder %s13, 7
      %p190 = por %p188, %p189
      %p191 = scmp.ne.s32.totalorder %s183, %s186
      %p192 = scmp.eq.s32.totalorder %s13, 0
      %p193 = por %p191, %p192
      %p194 = scmp.ne.s32.totalorder %s183, %s186
      %p195 = scmp.eq.s32.totalorder %s18, 7
      %p196 = por %p194, %p195
      %p197 = scmp.ne.s32.totalorder %s186, %s187
      %p198 = scmp.eq.s32.totalorder %s18, 0
      %p199 = por %p197, %p198
      %p200 = scmp.ne.s32.totalorder %s186, %s187
      %p201 = scmp.eq.s32.totalorder %s19, 7
      %p202 = por %p200, %p201
      %p204 = scmp.ne.s32.totalorder %s187, %s203
      %p205 = scmp.eq.s32.totalorder %s19, 0
      %p206 = por %p204, %p205
      %p207 = scmp.le.s32.totalorder 1, %s13
      %p208 = scmp.lt.s32.totalorder %s13, 9
      %p209 = pnand %p207, %p208
      %p210 = pneg %p209
      // Predicated region
      $region9: #{moe_forward.1} parent=5 // pred_check
        _
      $region10: #{moe_forward.1} parent=5 // pred_check_branch
        %212 = sbr.rel (%p209) target = $region12
      $region11: #{moe_forward.1} parent=5 // pred_region
        %s213 = ssub.s32 %s13, 1
        // Predicated region
        $region13: #{moe_forward.1} parent=11 // pred_check
          %p214 = pneg %p51
        $region14: #{moe_forward.1} parent=11 // pred_check_branch
          %216 = sbr.rel (%p214) target = $region16
        $region15: #{moe_forward.1} parent=11 // pred_region
          %s217 = smul.u32 2, %s22
          %p218 = scmp.lt.s32.totalorder %s217, 1
          %s219 = scalar_select %p218, %s217, 1
          %s220 = smul.addr %s219, 4
          %s221 = scalar_lea.vmem %s0, %s220
          %s222 = smul.u32 2, %s22
        $region16: #{moe_forward.1} parent=11 // pred_fallthru
          _
        // Predicated region
        $region17: #{moe_forward.1} parent=11 // pred_check
          %p223 = pneg %p152
        $region18: #{moe_forward.1} parent=11 // pred_check_branch
          %225 = sbr.rel (%p223) target = $region20
        $region19: #{moe_forward.1} parent=11 // pred_region
          _
        $region20: #{moe_forward.1} parent=11 // pred_fallthru
          _
        // Predicated region
        $region21: #{moe_forward.1} parent=11 // pred_check
          %p226 = pneg %p173
        $region22: #{moe_forward.1} parent=11 // pred_check_branch
          %228 = sbr.rel (%p226) target = $region24
        $region23: #{moe_forward.1} parent=11 // pred_region
          _
        $region24: #{moe_forward.1} parent=11 // pred_fallthru
          _
      $region12: #{moe_forward.1} parent=5 // pred_fallthru
        _
      %p229 = scmp.lt.s32.totalorder %s13, 8
      // Predicated region
      $region25: #{moe_forward.1} parent=5 // pred_check
        %p230 = pneg %p229
      $region26: #{moe_forward.1} parent=5 // pred_check_branch
        %232 = sbr.rel (%p230) target = $region28
      $region27: #{moe_forward.1} parent=5 // pred_region
        // Predicated region
        $region29: #{moe_forward.1} parent=27 // pred_check
          %p233 = pneg %p71
        $region30: #{moe_forward.1} parent=27 // pred_check_branch
          %235 = sbr.rel (%p233) target = $region32
        $region31: #{moe_forward.1} parent=27 // pred_region
          %p236 = scmp.lt.s32.totalorder %s21, 7
          %s237 = scalar_select %p236, %s21, 7
          %s238 = smul.addr %s237, 32
          %s239 = smul.addr %s238, 4
          %s240 = scalar_lea.vmem %s1, %s239
        $region32: #{moe_forward.1} parent=27 // pred_fallthru
          _
        // Predicated region
        $region33: #{moe_forward.1} parent=27 // pred_check
          %p241 = pneg %p97
        $region34: #{moe_forward.1} parent=27 // pred_check_branch
          %243 = sbr.rel (%p241) target = $region36
        $region35: #{moe_forward.1} parent=27 // pred_region
          %p244 = scmp.lt.s32.totalorder %s21, 7
          %s245 = scalar_select %p244, %s21, 7
          %s246 = smul.addr %s245, 16
          %s247 = smul.addr %s246, 4
          %s248 = scalar_lea.vmem %s2, %s247
        $region36: #{moe_forward.1} parent=27 // pred_fallthru
          _
        // Predicated region
        $region37: #{moe_forward.1} parent=27 // pred_check
          %p249 = pneg %p125
        $region38: #{moe_forward.1} parent=27 // pred_check_branch
          %251 = sbr.rel (%p249) target = $region40
        $region39: #{moe_forward.1} parent=27 // pred_region
          %s252 = smul.u32 2, %s20
          %p253 = scmp.lt.s32.totalorder %s21, 7
          %s254 = scalar_select %p253, %s21, 7
          %p255 = scmp.lt.s32.totalorder %s252, 1
          %s256 = scalar_select %p255, %s252, 1
          %s257 = smul.addr %s254, 2
          %s258 = sadd.s32 %s256, %s257
          %s259 = smul.addr %s258, 8
          %s260 = scalar_lea.vmem %s3, %s259
          %s261 = smul.u32 2, %s20
        $region40: #{moe_forward.1} parent=27 // pred_fallthru
          _
      $region28: #{moe_forward.1} parent=5 // pred_fallthru
        _
      %p262 = scmp.le.s32.totalorder 1, %s13
      %p263 = scmp.lt.s32.totalorder %s13, 9
      %p264 = pnand %p262, %p263
      %p265 = pneg %p264
      // Predicated region
      $region41: #{moe_forward.1} parent=5 // pred_check
        _
      $region42: #{moe_forward.1} parent=5 // pred_check_branch
        %267 = sbr.rel (%p264) target = $region44
      $region43: #{moe_forward.1} parent=5 // pred_region
        %s268 = ssub.s32 %s13, 1
        %s269 = smul.u32 2, %s22
        %p270 = scmp.lt.s32.totalorder %s269, 1
        %s271 = scalar_select %p270, %s269, 1
        %s272 = smul.addr %s271, 4
        %s273 = scalar_lea.vmem %s0, %s272
        %p274 = pneg %p51
        %p275 = pneg %p48
        %p276 = scmp.lt.s32.totalorder %s23, 7
        %s277 = scalar_select %p276, %s23, 7
        %s278 = smul.addr %s277, 32
        %s279 = smul.addr %s278, 4
        %s280 = scalar_lea.vmem %s1, %s279
        %p281 = pneg %p77
        %p282 = pneg %p74
        %p283 = scmp.lt.s32.totalorder %s23, 7
        %s284 = scalar_select %p283, %s23, 7
        %s285 = smul.addr %s284, 16
        %s286 = smul.addr %s285, 4
        %s287 = scalar_lea.vmem %s2, %s286
        %p288 = pneg %p103
        %p289 = pneg %p100
        %s290 = smul.u32 2, %s22
        %p291 = scmp.lt.s32.totalorder %s23, 7
        %s292 = scalar_select %p291, %s23, 7
        %p293 = scmp.lt.s32.totalorder %s290, 1
        %s294 = scalar_select %p293, %s290, 1
        %s295 = smul.addr %s292, 2
        %s296 = sadd.s32 %s294, %s295
        %s297 = smul.addr %s296, 8
        %s298 = scalar_lea.vmem %s3, %s297
        %p299 = pneg %p131
        %p300 = pneg %p128
        %p301 = pneg %p152
        %p302 = pneg %p149
        %p303 = pneg %p173
        %p304 = pneg %p170
        %p305 = pneg %p199
        %p306 = pneg %p196
        %s307 = smul.u32 2, %s22
        %p308 = scmp.lt.s32.totalorder %s307, 1
        %s309 = scalar_select %p308, %s307, 1
        %s310 = smul.addr %s309, 4
        %s311 = scalar_lea.vmem %s0, %s310
        %s312 = smul.u32 2, %s22
        %p313 = scmp.lt.s32.totalorder %s23, 7
        %s314 = scalar_select %p313, %s23, 7
        %s315 = smul.addr %s314, 32
        %s316 = smul.addr %s315, 4
        %s317 = scalar_lea.vmem %s1, %s316
        %p318 = scmp.lt.s32.totalorder %s23, 7
        %s319 = scalar_select %p318, %s23, 7
        %s320 = smul.addr %s319, 16
        %s321 = smul.addr %s320, 4
        %s322 = scalar_lea.vmem %s2, %s321
        %s323 = smul.u32 2, %s22
        %p324 = scmp.lt.s32.totalorder %s23, 7
        %s325 = scalar_select %p324, %s23, 7
        %p326 = scmp.lt.s32.totalorder %s323, 1
        %s327 = scalar_select %p326, %s323, 1
        %s328 = smul.addr %s325, 2
        %s329 = sadd.s32 %s327, %s328
        %s330 = smul.addr %s329, 8
        %s331 = scalar_lea.vmem %s3, %s330
        %s332 = smul.u32 2, %s22
        %s333 = smul.u32 2, %s22
        %p335 = scmp.eq.s32.totalorder %s23, 0
        // Predicated region
        $region45: #{moe_forward.1} parent=43 // pred_check
          %p336 = pneg %p335
        $region46: #{moe_forward.1} parent=43 // pred_check_branch
          %338 = sbr.rel (%p336) target = $region48
        $region47: #{moe_forward.1} parent=43 // pred_region
          %339 = vst [vmem:[#allocation2] sm:$0xff] 0.0
          %340 = vst [vmem:[#allocation2 + $0x8] sm:$0xff] 0.0
        $region48: #{moe_forward.1} parent=43 // pred_fallthru
          _
        %v341 = vld [vmem:[%s311] sm:$0xf]
        %v342 = vld [vmem:[%s311 + $0x4] sm:$0xf]
        %v343 = vld [vmem:[%s317] sm:$0xff]
        %v344 = vld [vmem:[%s317 + $0x8] sm:$0xff]
        %v345 = vld [vmem:[%s317 + $0x10] sm:$0xff]
        %v346 = vld [vmem:[%s317 + $0x18] sm:$0xff]
        %v347 = vld [vmem:[%s317 + $0x20] sm:$0xff]
        %v348 = vld [vmem:[%s317 + $0x28] sm:$0xff]
        %v349 = vld [vmem:[%s317 + $0x30] sm:$0xff]
        %v350 = vld [vmem:[%s317 + $0x38] sm:$0xff]
        %v351 = vld [vmem:[%s317 + $0x40] sm:$0xff]
        %v352 = vld [vmem:[%s317 + $0x48] sm:$0xff]
        %v353 = vld [vmem:[%s317 + $0x50] sm:$0xff]
        %v354 = vld [vmem:[%s317 + $0x58] sm:$0xff]
        %v355 = vld [vmem:[%s317 + $0x60] sm:$0xff]
        %v356 = vld [vmem:[%s317 + $0x68] sm:$0xff]
        %v357 = vld [vmem:[%s317 + $0x70] sm:$0xff]
        %v358 = vld [vmem:[%s317 + $0x78] sm:$0xff]
        %v361 = vunpack.c.l.b16 %v341
        %v362 = vunpack.c.l.b16 %v342
        %v363 = vpack.c.b16 %v362, %v361
        %v381 = vunpack.c.l.b16 %v343
        %v382 = vunpack.c.h.b16 %v343
        %v383 = vunpack.c.l.b16 %v344
        %v384 = vunpack.c.h.b16 %v344
        %v385 = vunpack.c.l.b16 %v345
        %v386 = vunpack.c.h.b16 %v345
        %v387 = vunpack.c.l.b16 %v346
        %v388 = vunpack.c.h.b16 %v346
        %v389 = vunpack.c.l.b16 %v347
        %v390 = vunpack.c.h.b16 %v347
        %v391 = vunpack.c.l.b16 %v348
        %v392 = vunpack.c.h.b16 %v348
        %v393 = vunpack.c.l.b16 %v349
        %v394 = vunpack.c.h.b16 %v349
        %v395 = vunpack.c.l.b16 %v350
        %v396 = vunpack.c.h.b16 %v350
        %v397 = vunpack.c.l.b16 %v351
        %v398 = vunpack.c.h.b16 %v351
        %v399 = vunpack.c.l.b16 %v352
        %v400 = vunpack.c.h.b16 %v352
        %v401 = vunpack.c.l.b16 %v353
        %v402 = vunpack.c.h.b16 %v353
        %v403 = vunpack.c.l.b16 %v354
        %v404 = vunpack.c.h.b16 %v354
        %v405 = vunpack.c.l.b16 %v355
        %v406 = vunpack.c.h.b16 %v355
        %v407 = vunpack.c.l.b16 %v356
        %v408 = vunpack.c.h.b16 %v356
        %v409 = vunpack.c.l.b16 %v357
        %v410 = vunpack.c.h.b16 %v357
        %v411 = vunpack.c.l.b16 %v358
        %v412 = vunpack.c.h.b16 %v358
        %v413 = vpack.c.b16 %v383, %v381
        %v414 = vpack.c.b16 %v384, %v382
        %v415 = vpack.c.b16 %v387, %v385
        %v416 = vpack.c.b16 %v388, %v386
        %v417 = vpack.c.b16 %v391, %v389
        %v418 = vpack.c.b16 %v392, %v390
        %v419 = vpack.c.b16 %v395, %v393
        %v420 = vpack.c.b16 %v396, %v394
        %v421 = vpack.c.b16 %v399, %v397
        %v422 = vpack.c.b16 %v400, %v398
        %v423 = vpack.c.b16 %v403, %v401
        %v424 = vpack.c.b16 %v404, %v402
        %v425 = vpack.c.b16 %v407, %v405
        %v426 = vpack.c.b16 %v408, %v406
        %v427 = vpack.c.b16 %v411, %v409
        %v428 = vpack.c.b16 %v412, %v410
        %445 = vmatprep.subr.bf16.mxu0 %v414
        %446 = vmatpush1.bf16.msra.mxu0 %v413
        %447 = vmatprep.subr.bf16.mxu0 %v416
        %448 = vmatpush1.bf16.msra.mxu0 %v415
        %449 = vmatprep.subr.bf16.mxu0 %v418
        %450 = vmatpush1.bf16.msra.mxu0 %v417
        %451 = vmatprep.subr.bf16.mxu0 %v420
        %452 = vmatpush1.bf16.msra.mxu0 %v419
        %453 = vmatprep.subr.bf16.mxu0 %v422
        %454 = vmatpush1.bf16.msra.mxu0 %v421
        %455 = vmatprep.subr.bf16.mxu0 %v424
        %456 = vmatpush1.bf16.msra.mxu0 %v423
        %457 = vmatprep.subr.bf16.mxu0 %v426
        %458 = vmatpush1.bf16.msra.mxu0 %v425
        %459 = vmatprep.subr.bf16.mxu0 %v428
        %460 = vmatpush1.bf16.msra.mxu0 %v427
        %461 = vmatprep.subr.bf16.mxu0 0
        %462 = vmatpush1.bf16.msra.mxu0 0
        %463 = vmatprep.subr.bf16.mxu0 0
        %464 = vmatpush1.bf16.msra.mxu0 0
        %465 = vmatprep.subr.bf16.mxu0 0
        %466 = vmatpush1.bf16.msra.mxu0 0
        %467 = vmatprep.subr.bf16.mxu0 0
        %468 = vmatpush1.bf16.msra.mxu0 0
        %469 = vmatprep.subr.bf16.mxu0 0
        %470 = vmatpush1.bf16.msra.mxu0 0
        %471 = vmatprep.subr.bf16.mxu0 0
        %472 = vmatpush1.bf16.msra.mxu0 0
        %473 = vmatprep.subr.bf16.mxu0 0
        %474 = vmatpush1.bf16.msra.mxu0 0
        %475 = vmatprep.subr.bf16.mxu0 0
        %476 = vmatpush1.bf16.msra.mxu0 0
        %477 = vmatprep.mubr.bf16.mxu0 0
        %478 = vmatmul.mubr.bf16.gmra.mrb[0].mxu0 %v363
        %v479 = vpop.f32.mrb[0].mxu0
        %v480 = vadd.f32 0.0, %v479
        %v481 = vpop.f32.mrb[0].mxu0
        %v482 = vadd.f32 0.0, %v481
        %v483 = vpop.f32.mrb[0].mxu0
        %v484 = vadd.f32 0.0, %v483
        %v485 = vpop.f32.mrb[0].mxu0
        %v486 = vadd.f32 0.0, %v485
        %487 = vdwg.mxu0
        %v488 = vxor.u32 %v480, 2147483648
        %v489 = vxor.u32 %v484, 2147483648
        %v490 = vmul.f32 %v488, 1.442695
        %v491 = vpow.pop %v490
        %v492 = vmul.f32 %v489, 1.442695
        %v493 = vpow.pop %v492
        %v494 = vadd.f32 %v491, 1.0
        %v495 = vadd.f32 %v493, 1.0
        %v496 = vrcp.pop %v494
        %v497 = vmul.f32 1.0, %v496
        %v498 = vrcp.pop %v495
        %v499 = vmul.f32 1.0, %v498
        %v500 = vmul.f32 %v480, %v497
        %v501 = vmul.f32 %v484, %v499
        %v502 = vmul.f32 %v500, %v482
        %v503 = vmul.f32 %v501, %v486
        %v504 = vpack.c.bf16 %v503, %v502
        %v505 = vld [vmem:[%s322] sm:$0xf]
        %v506 = vld [vmem:[%s322 + $0x4] sm:$0xf]
        %v507 = vld [vmem:[%s322 + $0x8] sm:$0xf]
        %v508 = vld [vmem:[%s322 + $0xc] sm:$0xf]
        %v509 = vld [vmem:[%s322 + $0x10] sm:$0xf]
        %v510 = vld [vmem:[%s322 + $0x14] sm:$0xf]
        %v511 = vld [vmem:[%s322 + $0x18] sm:$0xf]
        %v512 = vld [vmem:[%s322 + $0x1c] sm:$0xf]
        %v513 = vld [vmem:[%s322 + $0x20] sm:$0xf]
        %v514 = vld [vmem:[%s322 + $0x24] sm:$0xf]
        %v515 = vld [vmem:[%s322 + $0x28] sm:$0xf]
        %v516 = vld [vmem:[%s322 + $0x2c] sm:$0xf]
        %v517 = vld [vmem:[%s322 + $0x30] sm:$0xf]
        %v518 = vld [vmem:[%s322 + $0x34] sm:$0xf]
        %v519 = vld [vmem:[%s322 + $0x38] sm:$0xf]
        %v520 = vld [vmem:[%s322 + $0x3c] sm:$0xf]
        %v537 = vunpack.c.l.b16 %v505
        %v538 = vunpack.c.l.b16 %v506
        %v539 = vunpack.c.l.b16 %v507
        %v540 = vunpack.c.l.b16 %v508
        %v541 = vunpack.c.l.b16 %v509
        %v542 = vunpack.c.l.b16 %v510
        %v543 = vunpack.c.l.b16 %v511
        %v544 = vunpack.c.l.b16 %v512
        %v545 = vunpack.c.l.b16 %v513
        %v546 = vunpack.c.l.b16 %v514
        %v547 = vunpack.c.l.b16 %v515
        %v548 = vunpack.c.l.b16 %v516
        %v549 = vunpack.c.l.b16 %v517
        %v550 = vunpack.c.l.b16 %v518
        %v551 = vunpack.c.l.b16 %v519
        %v552 = vunpack.c.l.b16 %v520
        %v553 = vpack.c.b16 %v538, %v537
        %v554 = vpack.c.b16 %v540, %v539
        %v555 = vpack.c.b16 %v542, %v541
        %v556 = vpack.c.b16 %v544, %v543
        %v557 = vpack.c.b16 %v546, %v545
        %v558 = vpack.c.b16 %v548, %v547
        %v559 = vpack.c.b16 %v550, %v549
        %v560 = vpack.c.b16 %v552, %v551
        %569 = vmatprep.subr.bf16.mxu0 0
        %570 = vmatpush1.bf16.msra.mxu0 %v553
        %571 = vmatprep.subr.bf16.mxu0 0
        %572 = vmatpush1.bf16.msra.mxu0 %v554
        %573 = vmatprep.subr.bf16.mxu0 0
        %574 = vmatpush1.bf16.msra.mxu0 %v555
        %575 = vmatprep.subr.bf16.mxu0 0
        %576 = vmatpush1.bf16.msra.mxu0 %v556
        %577 = vmatprep.subr.bf16.mxu0 0
        %578 = vmatpush1.bf16.msra.mxu0 %v557
        %579 = vmatprep.subr.bf16.mxu0 0
        %580 = vmatpush1.bf16.msra.mxu0 %v558
        %581 = vmatprep.subr.bf16.mxu0 0
        %582 = vmatpush1.bf16.msra.mxu0 %v559
        %583 = vmatprep.subr.bf16.mxu0 0
        %584 = vmatpush1.bf16.msra.mxu0 %v560
        %585 = vmatprep.subr.bf16.mxu0 0
        %586 = vmatpush1.bf16.msra.mxu0 0
        %587 = vmatprep.subr.bf16.mxu0 0
        %588 = vmatpush1.bf16.msra.mxu0 0
        %589 = vmatprep.subr.bf16.mxu0 0
        %590 = vmatpush1.bf16.msra.mxu0 0
        %591 = vmatprep.subr.bf16.mxu0 0
        %592 = vmatpush1.bf16.msra.mxu0 0
        %593 = vmatprep.subr.bf16.mxu0 0
        %594 = vmatpush1.bf16.msra.mxu0 0
        %595 = vmatprep.subr.bf16.mxu0 0
        %596 = vmatpush1.bf16.msra.mxu0 0
        %597 = vmatprep.subr.bf16.mxu0 0
        %598 = vmatpush1.bf16.msra.mxu0 0
        %599 = vmatprep.subr.bf16.mxu0 0
        %600 = vmatpush1.bf16.msra.mxu0 0
        %601 = vmatprep.mubr.bf16.mxu0 0
        %602 = vmatmul.mubr.bf16.gmra.mrb[0].mxu0 %v504
        %v603 = vpop.f32.mrb[0].mxu0
        %v604 = vadd.f32 0.0, %v603
        %v605 = vpop.f32.mrb[0].mxu0
        %v606 = vpop.f32.mrb[0].mxu0
        %v607 = vadd.f32 0.0, %v606
        %v608 = vpop.f32.mrb[0].mxu0
        %609 = vdwg.mxu0
        %v610 = vld [vmem:[#allocation2] sm:$0xff]
        %v611 = vld [vmem:[#allocation2 + $0x8] sm:$0xff]
        %v612 = vld [vmem:[%s331] sm:$0xff]
        %v613 = vld [vmem:[%s331 + $0x8] sm:$0xff]
        %615 = vset.pattern.permute.xlu0 0
        %616 = vperm.xlu0 %615, %v612
        %v617 = vpop.permute.xlu0 %616
        %620 = vset.pattern.permute.xlu0 0
        %621 = vperm.xlu0 %620, %v613
        %v622 = vpop.permute.xlu0 %621
        %v624 = vmul.f32 %v604, %v617
        %v625 = vmul.f32 %v607, %v622
        %v626 = vadd.f32 %v610, %v624
        %v627 = vadd.f32 %v611, %v625
        %628 = vst [vmem:[#allocation2] sm:$0xff] %v626
        %629 = vst [vmem:[#allocation2 + $0x8] sm:$0xff] %v627
        %p630 = scmp.eq.s32.totalorder %s23, 7
        // Predicated region
        $region49: #{moe_forward.1} parent=43 // pred_check
          %p631 = pneg %p630
        $region50: #{moe_forward.1} parent=43 // pred_check_branch
          %633 = sbr.rel (%p631) target = $region52
        $region51: #{moe_forward.1} parent=43 // pred_region
          %v634 = vld [vmem:[%s4] sm:$0xff]
          %v635 = vld [vmem:[%s4 + $0x8] sm:$0xff]
          %v636 = vld [vmem:[%s4 + $0x10] sm:$0xff]
          %v637 = vld [vmem:[%s4 + $0x18] sm:$0xff]
          %v638 = vld [vmem:[%s4 + $0x20] sm:$0xff]
          %v639 = vld [vmem:[%s4 + $0x28] sm:$0xff]
          %v640 = vld [vmem:[%s4 + $0x30] sm:$0xff]
          %v641 = vld [vmem:[%s4 + $0x38] sm:$0xff]
          %v642 = vld [vmem:[%s4 + $0x40] sm:$0xff]
          %v643 = vld [vmem:[%s4 + $0x48] sm:$0xff]
          %v644 = vld [vmem:[%s4 + $0x50] sm:$0xff]
          %v645 = vld [vmem:[%s4 + $0x58] sm:$0xff]
          %v646 = vld [vmem:[%s4 + $0x60] sm:$0xff]
          %v647 = vld [vmem:[%s4 + $0x68] sm:$0xff]
          %v648 = vld [vmem:[%s4 + $0x70] sm:$0xff]
          %v649 = vld [vmem:[%s4 + $0x78] sm:$0xff]
          %v650 = vld [vmem:[%s4 + $0x80] sm:$0xff]
          %v651 = vld [vmem:[%s4 + $0x88] sm:$0xff]
          %v652 = vld [vmem:[%s4 + $0x90] sm:$0xff]
          %v653 = vld [vmem:[%s4 + $0x98] sm:$0xff]
          %v654 = vld [vmem:[%s4 + $0xa0] sm:$0xff]
          %v655 = vld [vmem:[%s4 + $0xa8] sm:$0xff]
          %v656 = vld [vmem:[%s4 + $0xb0] sm:$0xff]
          %v657 = vld [vmem:[%s4 + $0xb8] sm:$0xff]
          %v658 = vld [vmem:[%s4 + $0xc0] sm:$0xff]
          %v659 = vld [vmem:[%s4 + $0xc8] sm:$0xff]
          %v660 = vld [vmem:[%s4 + $0xd0] sm:$0xff]
          %v661 = vld [vmem:[%s4 + $0xd8] sm:$0xff]
          %v662 = vld [vmem:[%s4 + $0xe0] sm:$0xff]
          %v663 = vld [vmem:[%s4 + $0xe8] sm:$0xff]
          %v664 = vld [vmem:[%s4 + $0xf0] sm:$0xff]
          %v665 = vld [vmem:[%s4 + $0xf8] sm:$0xff]
          %v698 = vunpack.c.l.b16 %v634
          %v699 = vunpack.c.h.b16 %v634
          %v700 = vunpack.c.l.b16 %v635
          %v701 = vunpack.c.h.b16 %v635
          %v702 = vunpack.c.l.b16 %v636
          %v703 = vunpack.c.h.b16 %v636
          %v704 = vunpack.c.l.b16 %v637
          %v705 = vunpack.c.h.b16 %v637
          %v706 = vunpack.c.l.b16 %v638
          %v707 = vunpack.c.h.b16 %v638
          %v708 = vunpack.c.l.b16 %v639
          %v709 = vunpack.c.h.b16 %v639
          %v710 = vunpack.c.l.b16 %v640
          %v711 = vunpack.c.h.b16 %v640
          %v712 = vunpack.c.l.b16 %v641
          %v713 = vunpack.c.h.b16 %v641
          %v714 = vunpack.c.l.b16 %v642
          %v715 = vunpack.c.h.b16 %v642
          %v716 = vunpack.c.l.b16 %v643
          %v717 = vunpack.c.h.b16 %v643
          %v718 = vunpack.c.l.b16 %v644
          %v719 = vunpack.c.h.b16 %v644
          %v720 = vunpack.c.l.b16 %v645
          %v721 = vunpack.c.h.b16 %v645
          %v722 = vunpack.c.l.b16 %v646
          %v723 = vunpack.c.h.b16 %v646
          %v724 = vunpack.c.l.b16 %v647
          %v725 = vunpack.c.h.b16 %v647
          %v726 = vunpack.c.l.b16 %v648
          %v727 = vunpack.c.h.b16 %v648
          %v728 = vunpack.c.l.b16 %v649
          %v729 = vunpack.c.h.b16 %v649
          %v730 = vunpack.c.l.b16 %v650
          %v731 = vunpack.c.h.b16 %v650
          %v732 = vunpack.c.l.b16 %v651
          %v733 = vunpack.c.h.b16 %v651
          %v734 = vunpack.c.l.b16 %v652
          %v735 = vunpack.c.h.b16 %v652
          %v736 = vunpack.c.l.b16 %v653
          %v737 = vunpack.c.h.b16 %v653
          %v738 = vunpack.c.l.b16 %v654
          %v739 = vunpack.c.h.b16 %v654
          %v740 = vunpack.c.l.b16 %v655
          %v741 = vunpack.c.h.b16 %v655
          %v742 = vunpack.c.l.b16 %v656
          %v743 = vunpack.c.h.b16 %v656
          %v744 = vunpack.c.l.b16 %v657
          %v745 = vunpack.c.h.b16 %v657
          %v746 = vunpack.c.l.b16 %v658
          %v747 = vunpack.c.h.b16 %v658
          %v748 = vunpack.c.l.b16 %v659
          %v749 = vunpack.c.h.b16 %v659
          %v750 = vunpack.c.l.b16 %v660
          %v751 = vunpack.c.h.b16 %v660
          %v752 = vunpack.c.l.b16 %v661
          %v753 = vunpack.c.h.b16 %v661
          %v754 = vunpack.c.l.b16 %v662
          %v755 = vunpack.c.h.b16 %v662
          %v756 = vunpack.c.l.b16 %v663
          %v757 = vunpack.c.h.b16 %v663
          %v758 = vunpack.c.l.b16 %v664
          %v759 = vunpack.c.h.b16 %v664
          %v760 = vunpack.c.l.b16 %v665
          %v761 = vunpack.c.h.b16 %v665
          %v762 = vpack.c.b16 %v702, %v698
          %v763 = vpack.c.b16 %v703, %v699
          %v764 = vpack.c.b16 %v704, %v700
          %v765 = vpack.c.b16 %v705, %v701
          %v766 = vpack.c.b16 %v710, %v706
          %v767 = vpack.c.b16 %v711, %v707
          %v768 = vpack.c.b16 %v712, %v708
          %v769 = vpack.c.b16 %v713, %v709
          %v770 = vpack.c.b16 %v718, %v714
          %v771 = vpack.c.b16 %v719, %v715
          %v772 = vpack.c.b16 %v720, %v716
          %v773 = vpack.c.b16 %v721, %v717
          %v774 = vpack.c.b16 %v726, %v722
          %v775 = vpack.c.b16 %v727, %v723
          %v776 = vpack.c.b16 %v728, %v724
          %v777 = vpack.c.b16 %v729, %v725
          %v778 = vpack.c.b16 %v734, %v730
          %v779 = vpack.c.b16 %v735, %v731
          %v780 = vpack.c.b16 %v736, %v732
          %v781 = vpack.c.b16 %v737, %v733
          %v782 = vpack.c.b16 %v742, %v738
          %v783 = vpack.c.b16 %v743, %v739
          %v784 = vpack.c.b16 %v744, %v740
          %v785 = vpack.c.b16 %v745, %v741
          %v786 = vpack.c.b16 %v750, %v746
          %v787 = vpack.c.b16 %v751, %v747
          %v788 = vpack.c.b16 %v752, %v748
          %v789 = vpack.c.b16 %v753, %v749
          %v790 = vpack.c.b16 %v758, %v754
          %v791 = vpack.c.b16 %v759, %v755
          %v792 = vpack.c.b16 %v760, %v756
          %v793 = vpack.c.b16 %v761, %v757
          %826 = vmatprep.subr.bf16.mxu0 %v763
          %827 = vmatpush1.bf16.msra.mxu0 %v762
          %828 = vmatprep.subr.bf16.mxu0 %v767
          %829 = vmatpush1.bf16.msra.mxu0 %v766
          %830 = vmatprep.subr.bf16.mxu0 %v771
          %831 = vmatpush1.bf16.msra.mxu0 %v770
          %832 = vmatprep.subr.bf16.mxu0 %v775
          %833 = vmatpush1.bf16.msra.mxu0 %v774
          %834 = vmatprep.subr.bf16.mxu0 %v779
          %835 = vmatpush1.bf16.msra.mxu0 %v778
          %836 = vmatprep.subr.bf16.mxu0 %v783
          %837 = vmatpush1.bf16.msra.mxu0 %v782
          %838 = vmatprep.subr.bf16.mxu0 %v787
          %839 = vmatpush1.bf16.msra.mxu0 %v786
          %840 = vmatprep.subr.bf16.mxu0 %v791
          %841 = vmatpush1.bf16.msra.mxu0 %v790
          %842 = vmatprep.subr.bf16.mxu0 0
          %843 = vmatpush1.bf16.msra.mxu0 0
          %844 = vmatprep.subr.bf16.mxu0 0
          %845 = vmatpush1.bf16.msra.mxu0 0
          %846 = vmatprep.subr.bf16.mxu0 0
          %847 = vmatpush1.bf16.msra.mxu0 0
          %848 = vmatprep.subr.bf16.mxu0 0
          %849 = vmatpush1.bf16.msra.mxu0 0
          %850 = vmatprep.subr.bf16.mxu0 0
          %851 = vmatpush1.bf16.msra.mxu0 0
          %852 = vmatprep.subr.bf16.mxu0 0
          %853 = vmatpush1.bf16.msra.mxu0 0
          %854 = vmatprep.subr.bf16.mxu0 0
          %855 = vmatpush1.bf16.msra.mxu0 0
          %856 = vmatprep.subr.bf16.mxu0 0
          %857 = vmatpush1.bf16.msra.mxu0 0
          %858 = vmatprep.mubr.bf16.mxu0 0
          %859 = vmatmul.mubr.bf16.gmra.mrb[0].mxu0 %v363
          %v860 = vpop.f32.mrb[0].mxu0
          %v861 = vadd.f32 0.0, %v860
          %v862 = vpop.f32.mrb[0].mxu0
          %v863 = vadd.f32 0.0, %v862
          %v864 = vpop.f32.mrb[0].mxu0
          %v865 = vadd.f32 0.0, %v864
          %v866 = vpop.f32.mrb[0].mxu0
          %v867 = vadd.f32 0.0, %v866
          %868 = vdwg.mxu0
          %869 = vmatprep.subr.bf16.mxu0 %v765
          %870 = vmatpush1.bf16.msra.mxu0 %v764
          %871 = vmatprep.subr.bf16.mxu0 %v769
          %872 = vmatpush1.bf16.msra.mxu0 %v768
          %873 = vmatprep.subr.bf16.mxu0 %v773
          %874 = vmatpush1.bf16.msra.mxu0 %v772
          %875 = vmatprep.subr.bf16.mxu0 %v777
          %876 = vmatpush1.bf16.msra.mxu0 %v776
          %877 = vmatprep.subr.bf16.mxu0 %v781
          %878 = vmatpush1.bf16.msra.mxu0 %v780
          %879 = vmatprep.subr.bf16.mxu0 %v785
          %880 = vmatpush1.bf16.msra.mxu0 %v784
          %881 = vmatprep.subr.bf16.mxu0 %v789
          %882 = vmatpush1.bf16.msra.mxu0 %v788
          %883 = vmatprep.subr.bf16.mxu0 %v793
          %884 = vmatpush1.bf16.msra.mxu0 %v792
          %885 = vmatprep.subr.bf16.mxu0 0
          %886 = vmatpush1.bf16.msra.mxu0 0
          %887 = vmatprep.subr.bf16.mxu0 0
          %888 = vmatpush1.bf16.msra.mxu0 0
          %889 = vmatprep.subr.bf16.mxu0 0
          %890 = vmatpush1.bf16.msra.mxu0 0
          %891 = vmatprep.subr.bf16.mxu0 0
          %892 = vmatpush1.bf16.msra.mxu0 0
          %893 = vmatprep.subr.bf16.mxu0 0
          %894 = vmatpush1.bf16.msra.mxu0 0
          %895 = vmatprep.subr.bf16.mxu0 0
          %896 = vmatpush1.bf16.msra.mxu0 0
          %897 = vmatprep.subr.bf16.mxu0 0
          %898 = vmatpush1.bf16.msra.mxu0 0
          %899 = vmatprep.subr.bf16.mxu0 0
          %900 = vmatpush1.bf16.msra.mxu0 0
          %901 = vmatprep.mubr.bf16.mxu0 0
          %902 = vmatmul.mubr.bf16.gmra.mrb[0].mxu0 %v363
          %v903 = vpop.f32.mrb[0].mxu0
          %v904 = vadd.f32 0.0, %v903
          %v905 = vpop.f32.mrb[0].mxu0
          %v906 = vadd.f32 0.0, %v905
          %v907 = vpop.f32.mrb[0].mxu0
          %v908 = vadd.f32 0.0, %v907
          %v909 = vpop.f32.mrb[0].mxu0
          %v910 = vadd.f32 0.0, %v909
          %911 = vdwg.mxu0
          %v912 = vxor.u32 %v861, 2147483648
          %v913 = vxor.u32 %v863, 2147483648
          %v914 = vxor.u32 %v865, 2147483648
          %v915 = vxor.u32 %v867, 2147483648
          %v916 = vmul.f32 %v912, 1.442695
          %v917 = vpow.pop %v916
          %v918 = vmul.f32 %v913, 1.442695
          %v919 = vpow.pop %v918
          %v920 = vmul.f32 %v914, 1.442695
          %v921 = vpow.pop %v920
          %v922 = vmul.f32 %v915, 1.442695
          %v923 = vpow.pop %v922
          %v924 = vadd.f32 %v917, 1.0
          %v925 = vadd.f32 %v919, 1.0
          %v926 = vadd.f32 %v921, 1.0
          %v927 = vadd.f32 %v923, 1.0
          %v928 = vrcp.pop %v924
          %v929 = vmul.f32 1.0, %v928
          %v930 = vrcp.pop %v925
          %v931 = vmul.f32 1.0, %v930
          %v932 = vrcp.pop %v926
          %v933 = vmul.f32 1.0, %v932
          %v934 = vrcp.pop %v927
          %v935 = vmul.f32 1.0, %v934
          %v936 = vmul.f32 %v861, %v929
          %v937 = vmul.f32 %v863, %v931
          %v938 = vmul.f32 %v865, %v933
          %v939 = vmul.f32 %v867, %v935
          %v940 = vmul.f32 %v936, %v904
          %v941 = vmul.f32 %v937, %v906
          %v942 = vmul.f32 %v938, %v908
          %v943 = vmul.f32 %v939, %v910
          %v944 = vpack.c.bf16 %v942, %v940
          %v945 = vpack.c.bf16 %v943, %v941
          %v946 = vld [vmem:[%s5] sm:$0xf]
          %v947 = vld [vmem:[%s5 + $0x4] sm:$0xf]
          %v948 = vld [vmem:[%s5 + $0x8] sm:$0xf]
          %v949 = vld [vmem:[%s5 + $0xc] sm:$0xf]
          %v950 = vld [vmem:[%s5 + $0x10] sm:$0xf]
          %v951 = vld [vmem:[%s5 + $0x14] sm:$0xf]
          %v952 = vld [vmem:[%s5 + $0x18] sm:$0xf]
          %v953 = vld [vmem:[%s5 + $0x1c] sm:$0xf]
          %v954 = vld [vmem:[%s5 + $0x20] sm:$0xf]
          %v955 = vld [vmem:[%s5 + $0x24] sm:$0xf]
          %v956 = vld [vmem:[%s5 + $0x28] sm:$0xf]
          %v957 = vld [vmem:[%s5 + $0x2c] sm:$0xf]
          %v958 = vld [vmem:[%s5 + $0x30] sm:$0xf]
          %v959 = vld [vmem:[%s5 + $0x34] sm:$0xf]
          %v960 = vld [vmem:[%s5 + $0x38] sm:$0xf]
          %v961 = vld [vmem:[%s5 + $0x3c] sm:$0xf]
          %v962 = vld [vmem:[%s5 + $0x40] sm:$0xf]
          %v963 = vld [vmem:[%s5 + $0x44] sm:$0xf]
          %v964 = vld [vmem:[%s5 + $0x48] sm:$0xf]
          %v965 = vld [vmem:[%s5 + $0x4c] sm:$0xf]
          %v966 = vld [vmem:[%s5 + $0x50] sm:$0xf]
          %v967 = vld [vmem:[%s5 + $0x54] sm:$0xf]
          %v968 = vld [vmem:[%s5 + $0x58] sm:$0xf]
          %v969 = vld [vmem:[%s5 + $0x5c] sm:$0xf]
          %v970 = vld [vmem:[%s5 + $0x60] sm:$0xf]
          %v971 = vld [vmem:[%s5 + $0x64] sm:$0xf]
          %v972 = vld [vmem:[%s5 + $0x68] sm:$0xf]
          %v973 = vld [vmem:[%s5 + $0x6c] sm:$0xf]
          %v974 = vld [vmem:[%s5 + $0x70] sm:$0xf]
          %v975 = vld [vmem:[%s5 + $0x74] sm:$0xf]
          %v976 = vld [vmem:[%s5 + $0x78] sm:$0xf]
          %v977 = vld [vmem:[%s5 + $0x7c] sm:$0xf]
          %v1010 = vunpack.c.l.b16 %v946
          %v1011 = vunpack.c.l.b16 %v947
          %v1012 = vunpack.c.l.b16 %v948
          %v1013 = vunpack.c.l.b16 %v949
          %v1014 = vunpack.c.l.b16 %v950
          %v1015 = vunpack.c.l.b16 %v951
          %v1016 = vunpack.c.l.b16 %v952
          %v1017 = vunpack.c.l.b16 %v953
          %v1018 = vunpack.c.l.b16 %v954
          %v1019 = vunpack.c.l.b16 %v955
          %v1020 = vunpack.c.l.b16 %v956
          %v1021 = vunpack.c.l.b16 %v957
          %v1022 = vunpack.c.l.b16 %v958
          %v1023 = vunpack.c.l.b16 %v959
          %v1024 = vunpack.c.l.b16 %v960
          %v1025 = vunpack.c.l.b16 %v961
          %v1026 = vunpack.c.l.b16 %v962
          %v1027 = vunpack.c.l.b16 %v963
          %v1028 = vunpack.c.l.b16 %v964
          %v1029 = vunpack.c.l.b16 %v965
          %v1030 = vunpack.c.l.b16 %v966
          %v1031 = vunpack.c.l.b16 %v967
          %v1032 = vunpack.c.l.b16 %v968
          %v1033 = vunpack.c.l.b16 %v969
          %v1034 = vunpack.c.l.b16 %v970
          %v1035 = vunpack.c.l.b16 %v971
          %v1036 = vunpack.c.l.b16 %v972
          %v1037 = vunpack.c.l.b16 %v973
          %v1038 = vunpack.c.l.b16 %v974
          %v1039 = vunpack.c.l.b16 %v975
          %v1040 = vunpack.c.l.b16 %v976
          %v1041 = vunpack.c.l.b16 %v977
          %v1042 = vpack.c.b16 %v1011, %v1010
          %v1043 = vpack.c.b16 %v1013, %v1012
          %v1044 = vpack.c.b16 %v1015, %v1014
          %v1045 = vpack.c.b16 %v1017, %v1016
          %v1046 = vpack.c.b16 %v1019, %v1018
          %v1047 = vpack.c.b16 %v1021, %v1020
          %v1048 = vpack.c.b16 %v1023, %v1022
          %v1049 = vpack.c.b16 %v1025, %v1024
          %v1050 = vpack.c.b16 %v1027, %v1026
          %v1051 = vpack.c.b16 %v1029, %v1028
          %v1052 = vpack.c.b16 %v1031, %v1030
          %v1053 = vpack.c.b16 %v1033, %v1032
          %v1054 = vpack.c.b16 %v1035, %v1034
          %v1055 = vpack.c.b16 %v1037, %v1036
          %v1056 = vpack.c.b16 %v1039, %v1038
          %v1057 = vpack.c.b16 %v1041, %v1040
          %1074 = vmatprep.subr.bf16.mxu0 0
          %1075 = vmatpush1.bf16.msra.mxu0 %v1042
          %1076 = vmatprep.subr.bf16.mxu0 0
          %1077 = vmatpush1.bf16.msra.mxu0 %v1043
          %1078 = vmatprep.subr.bf16.mxu0 0
          %1079 = vmatpush1.bf16.msra.mxu0 %v1044
          %1080 = vmatprep.subr.bf16.mxu0 0
          %1081 = vmatpush1.bf16.msra.mxu0 %v1045
          %1082 = vmatprep.subr.bf16.mxu0 0
          %1083 = vmatpush1.bf16.msra.mxu0 %v1046
          %1084 = vmatprep.subr.bf16.mxu0 0
          %1085 = vmatpush1.bf16.msra.mxu0 %v1047
          %1086 = vmatprep.subr.bf16.mxu0 0
          %1087 = vmatpush1.bf16.msra.mxu0 %v1048
          %1088 = vmatprep.subr.bf16.mxu0 0
          %1089 = vmatpush1.bf16.msra.mxu0 %v1049
          %1090 = vmatprep.subr.bf16.mxu0 0
          %1091 = vmatpush1.bf16.msra.mxu0 %v1050
          %1092 = vmatprep.subr.bf16.mxu0 0
          %1093 = vmatpush1.bf16.msra.mxu0 %v1051
          %1094 = vmatprep.subr.bf16.mxu0 0
          %1095 = vmatpush1.bf16.msra.mxu0 %v1052
          %1096 = vmatprep.subr.bf16.mxu0 0
          %1097 = vmatpush1.bf16.msra.mxu0 %v1053
          %1098 = vmatprep.subr.bf16.mxu0 0
          %1099 = vmatpush1.bf16.msra.mxu0 %v1054
          %1100 = vmatprep.subr.bf16.mxu0 0
          %1101 = vmatpush1.bf16.msra.mxu0 %v1055
          %1102 = vmatprep.subr.bf16.mxu0 0
          %1103 = vmatpush1.bf16.msra.mxu0 %v1056
          %1104 = vmatprep.subr.bf16.mxu0 0
          %1105 = vmatpush1.bf16.msra.mxu0 %v1057
          %1106 = vmatprep.mubr.bf16.mxu0 %v945
          %1107 = vmatmul.mubr.bf16.gmra.mrb[0].mxu0 %v944
          %v1108 = vpop.f32.mrb[0].mxu0
          %v1109 = vadd.f32 0.0, %v1108
          %v1110 = vpop.f32.mrb[0].mxu0
          %v1111 = vpop.f32.mrb[0].mxu0
          %v1112 = vadd.f32 0.0, %v1111
          %v1113 = vpop.f32.mrb[0].mxu0
          %1114 = vdwg.mxu0
          %v1115 = vld [vmem:[#allocation2] sm:$0xff]
          %v1116 = vld [vmem:[#allocation2 + $0x8] sm:$0xff]
          %v1117 = vadd.f32 %v1115, %v1109
          %v1118 = vadd.f32 %v1116, %v1112
          %v1119 = vpack.c.bf16 %v1118, %v1117
          %v1121 = vunpack.c.l.b16 %v1119
          %v1122 = vunpack.c.h.b16 %v1119
          %v1123 = vpack.c.b16 %v1121, %v1121
          %v1124 = vpack.c.b16 %v1122, %v1122
          %1127 = vst [vmem:[#allocation3] sm:$0xf] %v1123
          %1128 = vst [vmem:[#allocation3 + $0x4] sm:$0xf] %v1124
        $region52: #{moe_forward.1} parent=43 // pred_fallthru
          _
        // Predicated region
        $region53: #{moe_forward.1} parent=43 // pred_check
          %p1129 = pneg %p196
        $region54: #{moe_forward.1} parent=43 // pred_check_branch
          %1131 = sbr.rel (%p1129) target = $region56
        $region55: #{moe_forward.1} parent=43 // pred_region
          %s1132 = smul.u32 2, %s22
          %s1134 = ssub.s32 128, 128
          %1135 = vsyncadd [#allocation4], %s1134
          %s1136 = smul.addr %s1132, 64
          %s1137 = scalar_lea.hbm %s6, %s1136
          %s1138 = sshll.u32 [#allocation3], 4
          %s1139 = int_to_ptr.vmem [resolvable:$true] %s1138
          %1144 = dma.vmem_to_hbm [thread:$0]  %s1139, 128, %s1137, [#allocation4], 64, 64, 4
        $region56: #{moe_forward.1} parent=43 // pred_fallthru
          _
        // Predicated region
        $region57: #{moe_forward.1} parent=43 // pred_check
          %p1145 = pneg %p196
        $region58: #{moe_forward.1} parent=43 // pred_check_branch
          %1147 = sbr.rel (%p1145) target = $region60
        $region59: #{moe_forward.1} parent=43 // pred_region
          %1148 = dma.done [#allocation4], 128
        $region60: #{moe_forward.1} parent=43 // pred_fallthru
          _
      $region44: #{moe_forward.1} parent=5 // pred_fallthru
        _
      %p1149 = scmp.le.s32.totalorder 2, %s13
      // Predicated region
      $region61: #{moe_forward.1} parent=5 // pred_check
        %p1150 = pneg %p1149
      $region62: #{moe_forward.1} parent=5 // pred_check_branch
        %1152 = sbr.rel (%p1150) target = $region64
      $region63: #{moe_forward.1} parent=5 // pred_region
        %s1153 = ssub.s32 %s13, 2
      $region64: #{moe_forward.1} parent=5 // pred_fallthru
        _
    $region6: #{moe_forward.1} parent=1 // loop_footer
      %s17 = sadd.s32 1, %s13
    $region7: #{moe_forward.1} parent=1 // loop_footer_branch
      %12 = sbr.rel target = $region3
    $region8: #{moe_forward.1} parent=1 // loop_exit
      _
    %1154 = vsyncpa [#allocation4], 1
    %s1155 = scalar_lea.sflag [#allocation4], 1
    %1156 = vsyncpa %s1155, 1

</llo_original>
